<compile_context>
chip_gen: v7x
topology: tpu7x:2x2x1
jax: 0.10.0
libtpu: 0.0.40
codegen_flags: <defaults>
</compile_context>

<pallas_src>
import jax
import jax.numpy as jnp
from jax.experimental import pallas as pl
from jax.experimental.pallas import tpu as pltpu


def _stf_kernel(x_ref, w_ref, b_ref, a_ref, o_ref):
    # x_ref : (bn, C, L)  native dtype   input block (L = lane-dense HW tile)
    # w_ref : (C, C)      1x1 conv weight [out_ch, in_ch]
    # b_ref : (C, 1)      conv bias
    # a_ref : (1,)        PReLU slope (SMEM scalar)
    # o_ref : (bn, C, L)  native dtype
    x = x_ref[...].astype(jnp.float32)                      # cast in VMEM
    w = w_ref[...].astype(jnp.float32)                      # (C, C)
    bn = x.shape[0]
    wb = jnp.broadcast_to(w, (bn,) + w.shape)               # tiny (bn, C, C)
    # Single batched contraction for the whole block (no per-batch unroll).
    y = jnp.einsum("boc,bcl->bol", wb, x,
                   preferred_element_type=jnp.float32)      # (bn, C, L)
    y = y + b_ref[...].astype(jnp.float32)[None, :, :]      # one bias broadcast
    alpha = a_ref[0]
    y = jnp.where(y > 0, y, alpha * y)                      # PReLU
    o_ref[...] = (y + x).astype(o_ref.dtype)                # identity shortcut


def spatial_temporal_fusion(x, weight, bias, prelu_a):
    """Forward pass of SpatialTemporalFusion.

    x        : (N, C, H, W), C == obs_len
    weight   : (C, C, 1, 1) conv weight
    bias     : (C,)         conv bias
    prelu_a  : (1,)         PReLU slope
    Returns jnp.squeeze(prelu(conv1x1(x)) + x).
    """
    N, C, H, W = x.shape
    HW = H * W

    x2 = x.reshape(N, C, HW)                        # free reshape, native dtype
    w2 = weight.reshape(C, C).astype(jnp.float32)   # tiny params -> f32 is free
    b2 = bias.reshape(C, 1).astype(jnp.float32)
    a2 = prelu_a.reshape(1).astype(jnp.float32)

    itemsize = x2.dtype.itemsize
    TARGET = 6 * 1024 * 1024          # ~6 MiB blocks: fat DMAs, fits v7x VMEM

    # Lane (HW) tile: multiple of 128 (unmasked stores) or the full extent.
    if HW <= 128 or HW * C * itemsize <= TARGET:
        hw_tile = HW
    else:
        hw_tile = max(128, (TARGET // (C * itemsize * 128)) * 128)
        hw_tile = min(hw_tile, max(128, (HW // 128) * 128))
    hw_steps = pl.cdiv(HW, hw_tile)

    # Batch tile: fill the block budget, but keep >=2 grid steps when possible
    # (pipelining + both v7x TensorCores even when N is tiny).
    per_batch = C * hw_tile * itemsize
    bn = max(1, min(N, TARGET // max(per_batch, 1)))
    if hw_steps == 1 and N > 1 and bn >= N:
        bn = pl.cdiv(N, 2)
    grid = (pl.cdiv(N, bn), hw_steps)

    # Explicit VMEM budget: ~double-buffered in+out (f32 worst case) + headroom,
    # above the 16 MiB v5e scoped default and under v7x's 64 MiB physical.
    block_bytes_f32 = bn * C * hw_tile * 4
    vmem_limit = int(min(max(6 * block_bytes_f32, 16 * 1024 * 1024),
                         48 * 1024 * 1024))

    out = pl.pallas_call(
        _stf_kernel,
        out_shape=jax.ShapeDtypeStruct((N, C, HW), x.dtype),
        grid=grid,
        in_specs=[
            pl.BlockSpec((bn, C, hw_tile), lambda n, l: (n, 0, l)),
            pl.BlockSpec((C, C), lambda n, l: (0, 0)),
            pl.BlockSpec((C, 1), lambda n, l: (0, 0)),
            pl.BlockSpec(memory_space=pltpu.SMEM),
        ],
        out_specs=pl.BlockSpec((bn, C, hw_tile), lambda n, l: (n, 0, l)),
        compiler_params=pltpu.CompilerParams(
            dimension_semantics=("parallel", "parallel"),
            vmem_limit_bytes=vmem_limit,
        ),
        cost_estimate=pl.CostEstimate(
            flops=2 * N * C * C * HW,
            transcendentals=0,
            bytes_accessed=2 * N * C * HW * itemsize + C * C * 4 + C * 4 + 4,
        ),
    )(x2, w2, b2, a2)

    out = out.reshape(N, C, H, W)
    return jnp.squeeze(out)                         # matches torch .squeeze()


def _reference(x, weight, bias, prelu_a):
    y = jax.lax.conv_general_dilated(
        x.astype(jnp.float32), weight.astype(jnp.float32),
        window_strides=(1, 1), padding="VALID",
        dimension_numbers=("NCHW", "OIHW", "NCHW"))
    y = y + bias.reshape(1, -1, 1, 1)
    a = prelu_a.reshape(())
    y = jnp.where(y > 0, y, a * y)
    return jnp.squeeze(y + x.astype(jnp.float32))


if __name__ == "__main__":
    key = jax.random.PRNGKey(0)
    kx, kw, kb = jax.random.split(key, 3)

    # Shapes implied by the module: NCHW with C == obs_len == 8.
    N, C, H, W = 2, 8, 16, 16
    x = jax.random.normal(kx, (N, C, H, W), dtype=jnp.float32)

    # Deterministic parameter init (nn.Conv2d(8, 8, 1) + nn.PReLU() shapes).
    fan_in = C * 1 * 1
    bound = 1.0 / (fan_in ** 0.5)
    weight = jax.random.uniform(kw, (C, C, 1, 1), jnp.float32, -bound, bound)
    bias = jax.random.uniform(kb, (C,), jnp.float32, -bound, bound)
    prelu_a = jnp.array([0.25], dtype=jnp.float32)   # PyTorch PReLU default

    out = spatial_temporal_fusion(x, weight, bias, prelu_a)
    out = jax.block_until_ready(out)

    ref = _reference(x, weight, bias, prelu_a)
    assert out.shape == ref.shape, (out.shape, ref.shape)
    assert jnp.allclose(out.astype(jnp.float32), ref, atol=1e-4, rtol=1e-4), \
        float(jnp.max(jnp.abs(out.astype(jnp.float32) - ref)))

    print("KERNEL_OK")
</pallas_src>

<mosaic_0001>
module attributes {stable_mosaic.version = 11 : i64} {
  func.func @_stf_kernel(%arg0: i32, %arg1: i32, %arg2: memref<1x8x256xf32, #tpu.memory_space<vmem>>, %arg3: memref<8x8xf32, #tpu.memory_space<vmem>>, %arg4: memref<8x1xf32, #tpu.memory_space<vmem>>, %arg5: memref<1xf32, #tpu.memory_space<smem>>, %arg6: memref<1x8x256xf32, #tpu.memory_space<vmem>>) attributes {dimension_semantics = [#tpu.dimension_semantics<parallel>, #tpu.dimension_semantics<parallel>], iteration_bounds = array<i64: 2, 1>, scalar_prefetch = 0 : i64, scratch_operands = 0 : i64, tpu.core_type = #tpu.core_type<tc>, window_params = [{transform_indices = @transform_0, window_bounds = array<i64: 1, 8, 256>}, {pipeline_mode = #tpu.pipeline_mode<synchronous>, transform_indices = @transform_1, window_bounds = array<i64: 8, 8>}, {pipeline_mode = #tpu.pipeline_mode<synchronous>, transform_indices = @transform_2, window_bounds = array<i64: 8, 1>}, {transform_indices = @transform_3, window_bounds = array<i64: 1>}, {transform_indices = @transform_4, window_bounds = array<i64: 1, 8, 256>}]} {
    %c0 = arith.constant 0 : index
    %c0_0 = arith.constant 0 : index
    %c0_1 = arith.constant 0 : index
    %0 = vector.load %arg2[%c0, %c0_0, %c0_1] : memref<1x8x256xf32, #tpu.memory_space<vmem>>, vector<1x8x256xf32>
    %c0_2 = arith.constant 0 : index
    %c0_3 = arith.constant 0 : index
    %1 = vector.load %arg3[%c0_2, %c0_3] : memref<8x8xf32, #tpu.memory_space<vmem>>, vector<8x8xf32>
    %2 = vector.shape_cast %1 : vector<8x8xf32> to vector<1x8x8xf32>
    "tpu.trace_start"() <{level = 10 : i32, message = "boc,bcl->bol"}> : () -> ()
    %cst = arith.constant dense<0.000000e+00> : vector<1x8x256xf32>
    %3 = tpu.matmul %2, %0, %cst {dimension_numbers = #tpu.dot_dimension_numbers<[2], [1], [1], [2], [0, 0, 0, 1, 1, 2], [0], [0]>} : vector<1x8x8xf32>, vector<1x8x256xf32>, vector<1x8x256xf32> -> vector<1x8x256xf32>
    "tpu.trace_stop"() : () -> ()
    %c0_4 = arith.constant 0 : index
    %c0_5 = arith.constant 0 : index
    %4 = vector.load %arg4[%c0_4, %c0_5] : memref<8x1xf32, #tpu.memory_space<vmem>>, vector<8x1xf32>
    %5 = vector.shape_cast %4 : vector<8x1xf32> to vector<1x8x1xf32>
    %6 = vector.broadcast %5 : vector<1x8x1xf32> to vector<1x8x256xf32>
    %7 = arith.addf %3, %6 : vector<1x8x256xf32>
    %c0_6 = arith.constant 0 : index
    %8 = memref.load %arg5[%c0_6] : memref<1xf32, #tpu.memory_space<smem>>
    %cst_7 = arith.constant 0.000000e+00 : f32
    %9 = vector.broadcast %cst_7 : f32 to vector<1x8x256xf32>
    %10 = arith.cmpf ogt, %7, %9 : vector<1x8x256xf32>
    %11 = vector.broadcast %8 : f32 to vector<1x8x256xf32>
    %12 = arith.mulf %11, %7 : vector<1x8x256xf32>
    %13 = arith.select %10, %7, %12 : vector<1x8x256xi1>, vector<1x8x256xf32>
    %14 = arith.addf %13, %0 : vector<1x8x256xf32>
    %c0_8 = arith.constant 0 : index
    %c0_9 = arith.constant 0 : index
    %c0_10 = arith.constant 0 : index
    %15 = vector.load %arg6[%c0_8, %c0_9, %c0_10] : memref<1x8x256xf32, #tpu.memory_space<vmem>>, vector<1x8x256xf32>
    tpu.vector_store %arg6[%c0_8, %c0_9, %c0_10], %14 {strides = array<i32>} : memref<1x8x256xf32, #tpu.memory_space<vmem>>, vector<1x8x256xf32>,
    return
  }
  func.func @transform_0(%arg0: i32, %arg1: i32) -> (i32, i32, i32) {
    %c0_i32 = arith.constant 0 : i32
    %c0_i32_0 = arith.constant 0 : i32
    return %arg0, %c0_i32, %arg1 : i32, i32, i32
  }
  func.func @transform_1(%arg0: i32, %arg1: i32) -> (i32, i32) {
    %c0_i32 = arith.constant 0 : i32
    %c0_i32_0 = arith.constant 0 : i32
    %c0_i32_1 = arith.constant 0 : i32
    return %c0_i32, %c0_i32_0 : i32, i32
  }
  func.func @transform_2(%arg0: i32, %arg1: i32) -> (i32, i32) {
    %c0_i32 = arith.constant 0 : i32
    %c0_i32_0 = arith.constant 0 : i32
    %c0_i32_1 = arith.constant 0 : i32
    return %c0_i32, %c0_i32_0 : i32, i32
  }
  func.func @transform_3(%arg0: i32, %arg1: i32) -> i32 {
    %c0_i32 = arith.constant 0 : i32
    %c0_i32_0 = arith.constant 0 : i32
    return %c0_i32 : i32
  }
  func.func @transform_4(%arg0: i32, %arg1: i32) -> (i32, i32, i32) {
    %c0_i32 = arith.constant 0 : i32
    %c0_i32_0 = arith.constant 0 : i32
    return %arg0, %c0_i32, %arg1 : i32, i32, i32
  }
}

</mosaic_0001>

<llo_original>
// kernel: tpu_custom_call.1
$region0: #{tpu_custom_call.1}
  #allocation0 [shape = 'u32[]', space=smem, size = 0x4, offset = 0x4, fixed_abs, tag = 'smem constant byte address 0x4 - core index']
  #allocation1 [shape = 'u32[144,128]{1,0:T(1,128)}', space=vmem, size = 0x12000, scoped, tag = 'internal scratch']
  #allocation2 [shape = 'f32[1]{0:T(128)S(6)}', space=smem, size = 0x200, scoped, tag = 'scoped memory for tpu_custom_call.1']
  %s0 = inlined_call_operand.hbm [shape: f32[2,8,256], index: 0, kind: input, shape index: {}]
  %s1 = inlined_call_operand.vmem [shape: f32[8,8], index: 1, kind: input, shape index: {}]
  %s2 = inlined_call_operand.vmem [shape: f32[8,1], index: 2, kind: input, shape index: {}]
  %s3 = inlined_call_operand.<no memory space> [shape: f32[1], index: 3, kind: input, shape index: {}]
  %s4 = inlined_call_operand.hbm [shape: f32[2,8,256], index: 4, kind: output, shape index: {}]
  %s5 = sld [smem:[#allocation0]]
  $region53: #{tpu_custom_call.1} parent=0
    _
  %s7 = ssub.s32 1, %s5
  %s8 = scalar_select 0, %s7, %s5
  %9 = sst [smem:[#allocation2]] %s3
  $region1: #{tpu_custom_call.1} parent=0
    #allocation3 [shape = 'u8[16384]{0}', space=vmem, size = 0x4000, scoped, tag = 'input window, operand 0']
    #allocation4 [shape = 's32[2]{0}', space=sflag, size = 0x8, scoped, tag = 'scoped memory for tpu_custom_call.1']
    #allocation5 [shape = 's32[2]{0}', space=sflag, size = 0x8, scoped, tag = 'scoped memory for tpu_custom_call.1']
    #allocation6 [shape = 'u8[16384]{0}', space=vmem, size = 0x4000, scoped, tag = 'output window, operand 0']
    %10 = vsyncpa [#allocation4], 0
    %s11 = scalar_lea.sflag [#allocation4], 1
    %12 = vsyncpa %s11, 0
    %13 = vsyncpa [#allocation5], 0
    %s14 = scalar_lea.sflag [#allocation5], 1
    %15 = vsyncpa %s14, 0
    loop: start=0, step=1, limit=4
    $region2: #{tpu_custom_call.1} parent=1 // loop_pre_header
      _
    $region3: #{tpu_custom_call.1} parent=1 // loop_header
      %s17 = sphi 0, %s21
      %p18 = scmp.ge.s32.totalorder %s17, 4
      %s24 = sphi 0, %s36
      %s25 = sphi 0, %s32
      %s26 = sphi 0, %s24
      %s27 = sphi 0, %s25
      %s28 = sphi 0, %s26
      %s29 = sphi 0, %s27
      %s41 = sphi 0, %s43
      %s44 = sphi 0, %s41
      %s45 = sphi 0, %s44
      %s61 = sphi 0, %s45
      %s65 = sphi 0, %s65
      %s67 = sphi 0, %s65
      %s68 = sphi 0, %s67
      %s82 = sphi 0, %s68
      %s86 = sphi 0, %s86
      %s88 = sphi 0, %s86
      %s89 = sphi 0, %s88
      %s103 = sphi 0, %s89
      %s107 = sphi 0, %s107
      %s109 = sphi 0, %s107
      %s110 = sphi 0, %s109
      %s124 = sphi 0, %s110
      %s132 = sphi 0, %s134
      %s135 = sphi 0, %s132
      %s136 = sphi 0, %s135
      %s152 = sphi 0, %s136
    $region4: #{tpu_custom_call.1} parent=1 // loop_header_branch
      %20 = sbr.rel (%p18) target = $region8
    $region5: #{tpu_custom_call.1} parent=1 // loop_body
      %s22 = ssub.s32 %s17, 1
      %s23 = ssub.s32 %s17, 2
      %s30 = sadd.s32 1, %s25
      %p31 = scmp.ge.s32.totalorder %s30, 1
      %s32 = scalar_select %p31, 0, %s30
      %s33 = sadd.s32 1, %s24
      %s34 = scalar_select %p31, %s33, %s24
      %p35 = scmp.ge.s32.totalorder %s34, 2
      %s36 = scalar_select %p35, 0, %s34
      %s37 = ssub.s32 %s24, %s36
      %s38 = ssub.s32 %s25, %s32
      %s39 = sor.u32 %s37, %s38
      %p40 = scmp.eq.s32.totalorder %s39, 0
      %s42 = sadd.s32 %s41, 1
      %s43 = scalar_select %p40, %s41, %s42
      %p46 = pneg %p40
      %p47 = scmp.eq.s32.totalorder %s17, 1
      %p48 = por %p46, %p47
      %p49 = scmp.ne.s32.totalorder %s41, %s44
      %p50 = scmp.eq.s32.totalorder %s17, 0
      %p51 = por %p49, %p50
      %p52 = scmp.ne.s32.totalorder %s41, %s44
      %p53 = scmp.eq.s32.totalorder %s22, 1
      %p54 = por %p52, %p53
      %p55 = scmp.ne.s32.totalorder %s44, %s45
      %p56 = scmp.eq.s32.totalorder %s22, 0
      %p57 = por %p55, %p56
      %p58 = scmp.ne.s32.totalorder %s44, %s45
      %p59 = scmp.eq.s32.totalorder %s23, 1
      %p60 = por %p58, %p59
      %p62 = scmp.ne.s32.totalorder %s45, %s61
      %p63 = scmp.eq.s32.totalorder %s23, 0
      %p64 = por %p62, %p63
      %s66 = sadd.s32 %s65, 1
      %p69 = scmp.eq.s32.totalorder %s17, 1
      %p70 = scmp.ne.s32.totalorder %s65, %s67
      %p71 = scmp.eq.s32.totalorder %s17, 0
      %p72 = por %p70, %p71
      %p73 = scmp.ne.s32.totalorder %s65, %s67
      %p74 = scmp.eq.s32.totalorder %s22, 1
      %p75 = por %p73, %p74
      %p76 = scmp.ne.s32.totalorder %s67, %s68
      %p77 = scmp.eq.s32.totalorder %s22, 0
      %p78 = por %p76, %p77
      %p79 = scmp.ne.s32.totalorder %s67, %s68
      %p80 = scmp.eq.s32.totalorder %s23, 1
      %p81 = por %p79, %p80
      %p83 = scmp.ne.s32.totalorder %s68, %s82
      %p84 = scmp.eq.s32.totalorder %s23, 0
      %p85 = por %p83, %p84
      %s87 = sadd.s32 %s86, 1
      %p90 = scmp.eq.s32.totalorder %s17, 1
      %p91 = scmp.ne.s32.totalorder %s86, %s88
      %p92 = scmp.eq.s32.totalorder %s17, 0
      %p93 = por %p91, %p92
      %p94 = scmp.ne.s32.totalorder %s86, %s88
      %p95 = scmp.eq.s32.totalorder %s22, 1
      %p96 = por %p94, %p95
      %p97 = scmp.ne.s32.totalorder %s88, %s89
      %p98 = scmp.eq.s32.totalorder %s22, 0
      %p99 = por %p97, %p98
      %p100 = scmp.ne.s32.totalorder %s88, %s89
      %p101 = scmp.eq.s32.totalorder %s23, 1
      %p102 = por %p100, %p101
      %p104 = scmp.ne.s32.totalorder %s89, %s103
      %p105 = scmp.eq.s32.totalorder %s23, 0
      %p106 = por %p104, %p105
      %s108 = sadd.s32 %s107, 1
      %p111 = scmp.eq.s32.totalorder %s17, 1
      %p112 = scmp.ne.s32.totalorder %s107, %s109
      %p113 = scmp.eq.s32.totalorder %s17, 0
      %p114 = por %p112, %p113
      %p115 = scmp.ne.s32.totalorder %s107, %s109
      %p116 = scmp.eq.s32.totalorder %s22, 1
      %p117 = por %p115, %p116
      %p118 = scmp.ne.s32.totalorder %s109, %s110
      %p119 = scmp.eq.s32.totalorder %s22, 0
      %p120 = por %p118, %p119
      %p121 = scmp.ne.s32.totalorder %s109, %s110
      %p122 = scmp.eq.s32.totalorder %s23, 1
      %p123 = por %p121, %p122
      %p125 = scmp.ne.s32.totalorder %s110, %s124
      %p126 = scmp.eq.s32.totalorder %s23, 0
      %p127 = por %p125, %p126
      %s128 = ssub.s32 %s24, %s36
      %s129 = ssub.s32 %s25, %s32
      %s130 = sor.u32 %s128, %s129
      %p131 = scmp.eq.s32.totalorder %s130, 0
      %s133 = sadd.s32 %s132, 1
      %s134 = scalar_select %p131, %s132, %s133
      %p137 = pneg %p131
      %p138 = scmp.eq.s32.totalorder %s17, 1
      %p139 = por %p137, %p138
      %p140 = scmp.ne.s32.totalorder %s132, %s135
      %p141 = scmp.eq.s32.totalorder %s17, 0
      %p142 = por %p140, %p141
      %p143 = scmp.ne.s32.totalorder %s132, %s135
      %p144 = scmp.eq.s32.totalorder %s22, 1
      %p145 = por %p143, %p144
      %p146 = scmp.ne.s32.totalorder %s135, %s136
      %p147 = scmp.eq.s32.totalorder %s22, 0
      %p148 = por %p146, %p147
      %p149 = scmp.ne.s32.totalorder %s135, %s136
      %p150 = scmp.eq.s32.totalorder %s23, 1
      %p151 = por %p149, %p150
      %p153 = scmp.ne.s32.totalorder %s136, %s152
      %p154 = scmp.eq.s32.totalorder %s23, 0
      %p155 = por %p153, %p154
      %p156 = scmp.le.s32.totalorder 1, %s17
      %p157 = scmp.lt.s32.totalorder %s17, 3
      %p158 = pnand %p156, %p157
      %p159 = pneg %p158
      // Predicated region
      $region9: #{tpu_custom_call.1} parent=5 // pred_check
        _
      $region10: #{tpu_custom_call.1} parent=5 // pred_check_branch
        %161 = sbr.rel (%p158) target = $region12
      $region11: #{tpu_custom_call.1} parent=5 // pred_region
        %s162 = ssub.s32 %s17, 1
        // Predicated region
        $region13: #{tpu_custom_call.1} parent=11 // pred_check
          %p163 = pneg %p78
        $region14: #{tpu_custom_call.1} parent=11 // pred_check_branch
          %165 = sbr.rel (%p163) target = $region16
        $region15: #{tpu_custom_call.1} parent=11 // pred_region
          _
        $region16: #{tpu_custom_call.1} parent=11 // pred_fallthru
          _
        // Predicated region
        $region17: #{tpu_custom_call.1} parent=11 // pred_check
          %p166 = pneg %p99
        $region18: #{tpu_custom_call.1} parent=11 // pred_check_branch
          %168 = sbr.rel (%p166) target = $region20
        $region19: #{tpu_custom_call.1} parent=11 // pred_region
          _
        $region20: #{tpu_custom_call.1} parent=11 // pred_fallthru
          _
        // Predicated region
        $region21: #{tpu_custom_call.1} parent=11 // pred_check
          %p169 = pneg %p120
        $region22: #{tpu_custom_call.1} parent=11 // pred_check_branch
          %171 = sbr.rel (%p169) target = $region24
        $region23: #{tpu_custom_call.1} parent=11 // pred_region
          _
        $region24: #{tpu_custom_call.1} parent=11 // pred_fallthru
          _
      $region12: #{tpu_custom_call.1} parent=5 // pred_fallthru
        _
      %p172 = scmp.lt.s32.totalorder %s17, 2
      // Predicated region
      $region25: #{tpu_custom_call.1} parent=5 // pred_check
        %p173 = pneg %p172
      $region26: #{tpu_custom_call.1} parent=5 // pred_check_branch
        %175 = sbr.rel (%p173) target = $region28
      $region27: #{tpu_custom_call.1} parent=5 // pred_region
        // Predicated region
        $region29: #{tpu_custom_call.1} parent=27 // pred_check
          %p176 = pneg %p51
        $region30: #{tpu_custom_call.1} parent=27 // pred_check_branch
          %178 = sbr.rel (%p176) target = $region32
        $region31: #{tpu_custom_call.1} parent=27 // pred_region
          %s179 = sand.u32 %s41, 1
          %s180 = scalar_lea.sflag [#allocation4], %s179
          %s181 = sand.u32 %s41, 1
          %s182 = smul.addr %s181, 16
          %s183 = scalar_lea.vmem [#allocation3], %s182
          %s184 = smul.u32 2, %s25
          %s186 = ssub.s32 256, 256
          %187 = vsyncadd %s180, %s186
          %s188 = smul.addr %s24, 2
          %s189 = sadd.s32 %s184, %s188
          %s190 = smul.addr %s189, 128
          %s191 = scalar_lea.hbm %s0, %s190
          %s193 = sshll.u32 %s183, 4
          %s194 = int_to_ptr.vmem [resolvable:$true] %s193
          %196 = dma.hbm_to_vmem [thread:$0]  %s191, 256, %s194, %s180
        $region32: #{tpu_custom_call.1} parent=27 // pred_fallthru
          _
      $region28: #{tpu_custom_call.1} parent=5 // pred_fallthru
        _
      %p197 = scmp.le.s32.totalorder 1, %s17
      %p198 = scmp.lt.s32.totalorder %s17, 3
      %p199 = pnand %p197, %p198
      %p200 = pneg %p199
      // Predicated region
      $region33: #{tpu_custom_call.1} parent=5 // pred_check
        _
      $region34: #{tpu_custom_call.1} parent=5 // pred_check_branch
        %202 = sbr.rel (%p199) target = $region36
      $region35: #{tpu_custom_call.1} parent=5 // pred_region
        %s203 = ssub.s32 %s17, 1
        %s204 = sand.u32 %s44, 1
        %s205 = scalar_lea.sflag [#allocation4], %s204
        %s206 = sand.u32 %s44, 1
        %s207 = smul.addr %s206, 16
        %s208 = scalar_lea.vmem [#allocation3], %s207
        // Predicated region
        $region37: #{tpu_custom_call.1} parent=35 // pred_check
          %p209 = pneg %p57
        $region38: #{tpu_custom_call.1} parent=35 // pred_check_branch
          %211 = sbr.rel (%p209) target = $region40
        $region39: #{tpu_custom_call.1} parent=35 // pred_region
          %212 = dma.done %s205, 256
        $region40: #{tpu_custom_call.1} parent=35 // pred_fallthru
          _
        %s213 = sand.u32 %s44, 1
        %s214 = scalar_lea.sflag [#allocation4], %s213
        %s215 = sand.u32 %s44, 1
        %s216 = smul.addr %s215, 16
        %s217 = scalar_lea.vmem [#allocation3], %s216
        %p218 = pneg %p57
        %p219 = pneg %p54
        %p220 = pneg %p78
        %p221 = pneg %p75
        %p222 = pneg %p99
        %p223 = pneg %p96
        %p224 = pneg %p120
        %p225 = pneg %p117
        %p226 = pneg %p148
        %p227 = pneg %p145
        %s228 = sand.u32 %s135, 1
        %s229 = scalar_lea.sflag [#allocation5], %s228
        %s230 = sand.u32 %s135, 1
        %s231 = smul.addr %s230, 16
        %s232 = scalar_lea.vmem [#allocation6], %s231
        %s233 = smul.u32 2, %s27
        %s234 = smul.u32 2, %s27
        %v235 = vld [vmem:[%s208] sm:$0xff]
        %v236 = vld [vmem:[%s208 + $0x8] sm:$0xff]
        %v237 = vld [vmem:[%s1] sm:$0xff]
        %v238 = vld [vmem:[%s2] sm:$0xff]
        %240 = vset.pattern.permute.xlu0 0
        %241 = vperm.xlu0 %240, %v238
        %v242 = vpop.permute.xlu0 %241
        %vm244 = vcmask 64512
        %v246 = vsel %vm244, %v237, 0
        %248 = vmatprep.subr.mxu0 %v236
        %249 = vmatpush1.msra.mxu0 %v235
        %250 = vmatprep.subr.mxu0 0.0
        %251 = vmatpush1.msra.mxu0 0.0
        %252 = vmatprep.subr.mxu0 0.0
        %253 = vmatpush1.msra.mxu0 0.0
        %254 = vmatprep.subr.mxu0 0.0
        %255 = vmatpush1.msra.mxu0 0.0
        %256 = vmatprep.subr.mxu0 0.0
        %257 = vmatpush1.msra.mxu0 0.0
        %258 = vmatprep.subr.mxu0 0.0
        %259 = vmatpush1.msra.mxu0 0.0
        %260 = vmatprep.subr.mxu0 0.0
        %261 = vmatpush1.msra.mxu0 0.0
        %262 = vmatprep.subr.mxu0 0.0
        %263 = vmatpush1.msra.mxu0 0.0
        %264 = vmatprep.subr.mxu0 0.0
        %265 = vmatpush1.msra.mxu0 0.0
        %266 = vmatprep.subr.mxu0 0.0
        %267 = vmatpush1.msra.mxu0 0.0
        %268 = vmatprep.subr.mxu0 0.0
        %269 = vmatpush1.msra.mxu0 0.0
        %270 = vmatprep.subr.mxu0 0.0
        %271 = vmatpush1.msra.mxu0 0.0
        %272 = vmatprep.subr.mxu0 0.0
        %273 = vmatpush1.msra.mxu0 0.0
        %274 = vmatprep.subr.mxu0 0.0
        %275 = vmatpush1.msra.mxu0 0.0
        %276 = vmatprep.subr.mxu0 0.0
        %277 = vmatpush1.msra.mxu0 0.0
        %278 = vmatprep.subr.mxu0 0.0
        %279 = vmatpush1.msra.mxu0 0.0
        %280 = vmatprep.subr.mxu0 0.0
        %281 = vmatpush1.msra.mxu0 0.0
        %282 = vmatprep.subr.mxu0 0.0
        %283 = vmatpush1.msra.mxu0 0.0
        %284 = vmatprep.subr.mxu0 0.0
        %285 = vmatpush1.msra.mxu0 0.0
        %286 = vmatprep.subr.mxu0 0.0
        %287 = vmatpush1.msra.mxu0 0.0
        %288 = vmatprep.subr.mxu0 0.0
        %289 = vmatpush1.msra.mxu0 0.0
        %290 = vmatprep.subr.mxu0 0.0
        %291 = vmatpush1.msra.mxu0 0.0
        %292 = vmatprep.subr.mxu0 0.0
        %293 = vmatpush1.msra.mxu0 0.0
        %294 = vmatprep.subr.mxu0 0.0
        %295 = vmatpush1.msra.mxu0 0.0
        %296 = vmatprep.subr.mxu0 0.0
        %297 = vmatpush1.msra.mxu0 0.0
        %298 = vmatprep.subr.mxu0 0.0
        %299 = vmatpush1.msra.mxu0 0.0
        %300 = vmatprep.subr.mxu0 0.0
        %301 = vmatpush1.msra.mxu0 0.0
        %302 = vmatprep.subr.mxu0 0.0
        %303 = vmatpush1.msra.mxu0 0.0
        %304 = vmatprep.subr.mxu0 0.0
        %305 = vmatpush1.msra.mxu0 0.0
        %306 = vmatprep.subr.mxu0 0.0
        %307 = vmatpush1.msra.mxu0 0.0
        %308 = vmatprep.subr.mxu0 0.0
        %309 = vmatpush1.msra.mxu0 0.0
        %310 = vmatprep.subr.mxu0 0.0
        %311 = vmatpush1.msra.mxu0 0.0
        %312 = vmatprep.mubr.f32.mxu0 0.0
        %313 = vmatmul.mubr.f32.gmra.mrb[0].mxu0 %v246
        %v314 = vpop.f32.mrb[0].mxu0
        %v315 = vadd.f32 %v242, %v314
        %v316 = vpop.f32.mrb[0].mxu0
        %v317 = vadd.f32 %v242, %v316
        %318 = vdwg.mxu0
        %s319 = sld [smem:[#allocation2]]
        %vm320 = vcmp.gt.f32.partialorder %v315, 0.0
        %vm321 = vcmp.gt.f32.partialorder %v317, 0.0
        %v322 = vstv %s319
        %v323 = vmul.f32 %v322, %v315
        %v324 = vmul.f32 %v322, %v317
        %v325 = vsel %vm320, %v315, %v323
        %v326 = vsel %vm321, %v317, %v324
        %v327 = vadd.f32 %v325, %v235
        %v328 = vadd.f32 %v326, %v236
        %329 = vst [vmem:[%s232] sm:$0xff] %v327
        %330 = vst [vmem:[%s232 + $0x8] sm:$0xff] %v328
        %s331 = sand.u32 %s135, 1
        %s332 = scalar_lea.sflag [#allocation5], %s331
        %s333 = sand.u32 %s135, 1
        %s334 = smul.addr %s333, 16
        %s335 = scalar_lea.vmem [#allocation6], %s334
        // Predicated region
        $region41: #{tpu_custom_call.1} parent=35 // pred_check
          %p336 = pneg %p145
        $region42: #{tpu_custom_call.1} parent=35 // pred_check_branch
          %338 = sbr.rel (%p336) target = $region44
        $region43: #{tpu_custom_call.1} parent=35 // pred_region
          %s339 = smul.u32 2, %s27
          %s341 = ssub.s32 256, 256
          %342 = vsyncadd %s332, %s341
          %s343 = smul.addr %s26, 2
          %s344 = sadd.s32 %s339, %s343
          %s345 = smul.addr %s344, 128
          %s346 = scalar_lea.hbm %s4, %s345
          %s348 = sshll.u32 %s335, 4
          %s349 = int_to_ptr.vmem [resolvable:$true] %s348
          %351 = dma.vmem_to_hbm [thread:$0]  %s349, 256, %s346, %s332
        $region44: #{tpu_custom_call.1} parent=35 // pred_fallthru
          _
      $region36: #{tpu_custom_call.1} parent=5 // pred_fallthru
        _
      %p352 = scmp.le.s32.totalorder 2, %s17
      // Predicated region
      $region45: #{tpu_custom_call.1} parent=5 // pred_check
        %p353 = pneg %p352
      $region46: #{tpu_custom_call.1} parent=5 // pred_check_branch
        %355 = sbr.rel (%p353) target = $region48
      $region47: #{tpu_custom_call.1} parent=5 // pred_region
        %s356 = ssub.s32 %s17, 2
        // Predicated region
        $region49: #{tpu_custom_call.1} parent=47 // pred_check
          %p357 = pneg %p151
        $region50: #{tpu_custom_call.1} parent=47 // pred_check_branch
          %359 = sbr.rel (%p357) target = $region52
        $region51: #{tpu_custom_call.1} parent=47 // pred_region
          %s360 = sand.u32 %s136, 1
          %s361 = scalar_lea.sflag [#allocation5], %s360
          %s362 = sand.u32 %s136, 1
          %s363 = smul.addr %s362, 16
          %s364 = scalar_lea.vmem [#allocation6], %s363
          %365 = dma.done %s361, 256
        $region52: #{tpu_custom_call.1} parent=47 // pred_fallthru
          _
      $region48: #{tpu_custom_call.1} parent=5 // pred_fallthru
        _
    $region6: #{tpu_custom_call.1} parent=1 // loop_footer
      %s21 = sadd.s32 1, %s17
    $region7: #{tpu_custom_call.1} parent=1 // loop_footer_branch
      %16 = sbr.rel target = $region3
    $region8: #{tpu_custom_call.1} parent=1 // loop_exit
      _
    %366 = vsyncpa [#allocation4], 1
    %s367 = scalar_lea.sflag [#allocation4], 1
    %368 = vsyncpa %s367, 1
    %369 = vsyncpa [#allocation5], 1
    %s370 = scalar_lea.sflag [#allocation5], 1
    %371 = vsyncpa %s370, 1

</llo_original>
